<compile_context>
chip_gen: v6e
topology: v6e:2x2x1
jax: 0.10.0
libtpu: 0.0.40
codegen_flags: <defaults>
</compile_context>

<pallas_src>
import functools

import jax
import jax.numpy as jnp
from jax.experimental import pallas as pl
from jax.experimental.pallas import tpu as pltpu


def _round_up(x, m):
    return ((x + m - 1) // m) * m


def two_layer_net_kernel(x_ref, w1t_ref, b1_ref, w2t_ref, b2_ref, y_ref):
    """One (row-tile, H-chunk) grid step of y = relu(x @ W1^T + b1) @ W2^T + b2."""
    h_idx = pl.program_id(1)

    # First linear (this H chunk): bf16 MXU operands, f32 accumulation.
    x = x_ref[...].astype(jnp.bfloat16)
    h = jnp.dot(x, w1t_ref[...], preferred_element_type=jnp.float32)

    # Bias + ReLU (clamp(min=0)) in f32, fused with the bf16 cast: only the
    # bf16 hidden tile stays live for the second matmul (halves hidden VMEM).
    h = jnp.maximum(h + b1_ref[...], 0.0).astype(jnp.bfloat16)

    # Second linear partial product for this H chunk, f32 accumulation.
    part = jnp.dot(h, w2t_ref[...], preferred_element_type=jnp.float32)

    # Output block index is constant along the H axis -> it stays VMEM-resident
    # and acts as the f32 accumulator across H chunks.
    @pl.when(h_idx == 0)
    def _():
        y_ref[...] = (part + b2_ref[...]).astype(y_ref.dtype)

    @pl.when(h_idx > 0)
    def _():
        y_ref[...] = (y_ref[...] + part).astype(y_ref.dtype)


def prepare_params(w1, b1, w2, b2):
    """One-time parameter prep (do at init, NOT per forward call).

    PyTorch Linear layouts in:  w1 (H, D_in), b1 (H,), w2 (D_out, H), b2 (D_out,)
    Out: transposed, lane-padded (to 128 on every contracted/lane dim) bf16
    weights + f32 row-vector biases.  Zero padding is mathematically inert.
    """
    H, D_in = w1.shape
    D_out = w2.shape[0]
    D_in_p = _round_up(D_in, 128)
    H_p = _round_up(H, 128)
    D_out_p = _round_up(D_out, 128)

    w1t = jnp.pad(jnp.transpose(w1).astype(jnp.bfloat16),
                  ((0, D_in_p - D_in), (0, H_p - H)))              # (D_in_p, H_p)
    b1r = jnp.pad(b1.astype(jnp.float32), (0, H_p - H)).reshape(1, H_p)
    w2t = jnp.pad(jnp.transpose(w2).astype(jnp.bfloat16),
                  ((0, H_p - H), (0, D_out_p - D_out)))            # (H_p, D_out_p)
    b2r = jnp.pad(b2.astype(jnp.float32), (0, D_out_p - D_out)).reshape(1, D_out_p)
    return (w1t, b1r, w2t, b2r), D_out


def _vmem_capacity_bytes():
    """Per-core VMEM capacity; conservative 64 MiB (v7x) if the query fails."""
    try:
        return int(pltpu.get_tpu_info().vmem_capacity_bytes)
    except Exception:
        return 64 * 1024 * 1024


def _vmem_need_bytes(tn, th, n_h, D_in_p, D_out_p):
    w_buf = 1 if n_h == 1 else 2   # constant-index weights are single-buffered
    weight_bytes = w_buf * ((D_in_p + D_out_p) * th * 2 + (th + D_out_p) * 4)
    x_bytes = 2 * tn * D_in_p * 4          # double-buffered f32 x tile
    y_bytes = 2 * tn * D_out_p * 4         # double-buffered f32 y tile
    hid_bytes = tn * th * (4 + 2)          # f32 matmul result + bf16 hidden
    return weight_bytes + x_bytes + y_bytes + hid_bytes


def _select_tiles(N, D_in_p, H_p, D_out_p, vmem_cap):
    """Pick (tile_n, tile_h) so everything fits the chip's VMEM budget.

    Prefers H fully resident (weight-stationary) and the largest row tile that
    fits; naturally picks bigger tiles on 128 MiB parts and smaller on v7x.
    """
    budget = max(vmem_cap - 8 * 1024 * 1024, 16 * 1024 * 1024)
    th_cands = [H_p] + [t for t in (8192, 4096, 2048, 1024, 512, 256, 128)
                        if t < H_p and H_p % t == 0]
    tn_cands = (512, 256, 128, 64, 32, 16, 8)
    for th in th_cands:
        n_h = H_p // th
        for tn in tn_cands:
            tn_eff = min(tn, _round_up(N, 8))
            if _vmem_need_bytes(tn_eff, th, n_h, D_in_p, D_out_p) <= budget:
                return tn_eff, th
    # Last resort: smallest tiles (may still exceed budget for pathological
    # shapes; the compiler will report if so).
    return min(8, _round_up(N, 8)), min(128, H_p)


def two_layer_net_forward(x, prepared, d_out, *, tile_n=None, tile_h=None):
    """x: (N, D_in) f32. Returns (N, d_out) f32."""
    w1t, b1r, w2t, b2r = prepared
    N, D_in = x.shape
    D_in_p, H_p = w1t.shape
    D_out_p = w2t.shape[1]

    vmem_cap = _vmem_capacity_bytes()
    tn_auto, th_auto = _select_tiles(N, D_in_p, H_p, D_out_p, vmem_cap)
    tn = tn_auto if tile_n is None else min(tile_n, _round_up(N, 8))
    th = th_auto if tile_h is None else tile_h
    n_h = H_p // th

    # Pad rows to the row tile and columns to the lane-padded D_in (zero x
    # columns hit zero-padded w1t rows -> inert; x stream becomes lane-dense).
    N_p = _round_up(N, tn)
    x_p = x
    if N_p != N or D_in_p != D_in:
        x_p = jnp.pad(x, ((0, N_p - N), (0, D_in_p - D_in)))
    grid = (N_p // tn, n_h)

    # Constant-index inputs single-buffered; streamed weight chunks (n_h > 1)
    # keep the default 2-deep pipeline.
    w_mode = pl.Buffered(1) if n_h == 1 else pl.Buffered(2)

    # Right-size the VMEM request against the actual chip capacity.
    need = _vmem_need_bytes(tn, th, n_h, D_in_p, D_out_p)
    vmem_limit = int(min(vmem_cap - 4 * 1024 * 1024,
                         max(32 * 1024 * 1024, int(need * 1.25))))

    # Advisory cost estimate (padded dims = work actually done).
    flops = 2 * N_p * H_p * (D_in_p + D_out_p)
    weight_stream = (w1t.size * 2 + w2t.size * 2 + b1r.size * 4 + b2r.size * 4)
    bytes_accessed = (x_p.size * 4 + N_p * D_out_p * 4 +
                      weight_stream * (1 if n_h == 1 else N_p // tn))

    y_p = pl.pallas_call(
        two_layer_net_kernel,
        out_shape=jax.ShapeDtypeStruct((N_p, D_out_p), x.dtype),
        grid_spec=pltpu.PrefetchScalarGridSpec(
            num_scalar_prefetch=0,
            grid=grid,
            in_specs=[
                # x: row-tiled, resident across the H (reduction) axis.
                pl.BlockSpec((tn, D_in_p), lambda i, h: (i, 0)),
                # W1^T chunk over H.
                pl.BlockSpec((D_in_p, th), lambda i, h: (0, h),
                             pipeline_mode=w_mode),
                # b1 chunk over H.
                pl.BlockSpec((1, th), lambda i, h: (0, h),
                             pipeline_mode=w_mode),
                # W2^T chunk over H.
                pl.BlockSpec((th, D_out_p), lambda i, h: (h, 0),
                             pipeline_mode=w_mode),
                # b2: fully resident, single-buffered.
                pl.BlockSpec((1, D_out_p), lambda i, h: (0, 0),
                             pipeline_mode=pl.Buffered(1)),
            ],
            out_specs=pl.BlockSpec((tn, D_out_p), lambda i, h: (i, 0)),
        ),
        compiler_params=pltpu.CompilerParams(
            dimension_semantics=("parallel", "arbitrary"),
            vmem_limit_bytes=vmem_limit,
        ),
        cost_estimate=pl.CostEstimate(
            flops=flops, transcendentals=0, bytes_accessed=bytes_accessed),
    )(x_p, w1t, b1r, w2t, b2r)

    return y_p[:N, :d_out]


def two_layer_net(x, w1, b1, w2, b2):
    """Convenience wrapper matching torch TwoLayerNet.forward semantics.

    NOTE: re-runs prepare_params; for real use hoist prepare_params to init
    and call two_layer_net_forward directly (as done in __main__ below).
    """
    prepared, d_out = prepare_params(w1, b1, w2, b2)
    return two_layer_net_forward(x, prepared, d_out)


if __name__ == "__main__":
    # Small shapes consistent with the module: N x D_in -> H -> D_out.
    N, D_in, H, D_out = 8, 64, 32, 16

    key = jax.random.PRNGKey(0)
    kx, kw1, kb1, kw2, kb2 = jax.random.split(key, 5)

    x = jax.random.normal(kx, (N, D_in), dtype=jnp.float32)
    # PyTorch Linear parameter shapes: (out, in) and (out,).
    w1 = jax.random.normal(kw1, (H, D_in), dtype=jnp.float32) * 0.1
    b1 = jax.random.normal(kb1, (H,), dtype=jnp.float32) * 0.1
    w2 = jax.random.normal(kw2, (D_out, H), dtype=jnp.float32) * 0.1
    b2 = jax.random.normal(kb2, (D_out,), dtype=jnp.float32) * 0.1

    # One-time parameter prep (hoisted out of the per-call path).
    prepared, d_out = prepare_params(w1, b1, w2, b2)
    fwd = jax.jit(functools.partial(two_layer_net_forward,
                                    prepared=prepared, d_out=d_out))

    y = fwd(x)
    y = jax.block_until_ready(y)

    # Pure-JAX f32 reference (kernel uses bf16 MXU operands with f32 accumulate,
    # so compare with a tolerance appropriate for bf16 inputs).
    h_ref = jnp.maximum(x @ w1.T + b1, 0.0)
    y_ref = h_ref @ w2.T + b2
    assert y.shape == (N, D_out)
    assert jnp.allclose(y, y_ref, atol=2e-2, rtol=2e-2), (
        float(jnp.max(jnp.abs(y - y_ref))))

    print("KERNEL_OK")
</pallas_src>

<mosaic_0001>
module attributes {stable_mosaic.version = 11 : i64} {
  func.func @two_layer_net_kernel(%arg0: i32, %arg1: i32, %arg2: memref<8x128xf32, #tpu.memory_space<vmem>>, %arg3: memref<128x128xbf16, #tpu.memory_space<vmem>>, %arg4: memref<1x128xf32, #tpu.memory_space<vmem>>, %arg5: memref<128x128xbf16, #tpu.memory_space<vmem>>, %arg6: memref<1x128xf32, #tpu.memory_space<vmem>>, %arg7: memref<8x128xf32, #tpu.memory_space<vmem>>) attributes {dimension_semantics = [#tpu.dimension_semantics<parallel>, #tpu.dimension_semantics<arbitrary>], iteration_bounds = array<i64: 1, 1>, scalar_prefetch = 0 : i64, scratch_operands = 0 : i64, tpu.core_type = #tpu.core_type<tc>, window_params = [{transform_indices = @transform_0, window_bounds = array<i64: 8, 128>}, {pipeline_mode = #tpu.pipeline_mode<synchronous>, transform_indices = @transform_1, window_bounds = array<i64: 128, 128>}, {pipeline_mode = #tpu.pipeline_mode<synchronous>, transform_indices = @transform_2, window_bounds = array<i64: 1, 128>}, {pipeline_mode = #tpu.pipeline_mode<synchronous>, transform_indices = @transform_3, window_bounds = array<i64: 128, 128>}, {pipeline_mode = #tpu.pipeline_mode<synchronous>, transform_indices = @transform_4, window_bounds = array<i64: 1, 128>}, {transform_indices = @transform_5, window_bounds = array<i64: 8, 128>}]} {
    %c0 = arith.constant 0 : index
    %c0_0 = arith.constant 0 : index
    %0 = vector.load %arg2[%c0, %c0_0] : memref<8x128xf32, #tpu.memory_space<vmem>>, vector<8x128xf32>
    %1 = arith.truncf %0 : vector<8x128xf32> to vector<8x128xbf16>
    %c0_1 = arith.constant 0 : index
    %c0_2 = arith.constant 0 : index
    %2 = vector.load %arg3[%c0_1, %c0_2] : memref<128x128xbf16, #tpu.memory_space<vmem>>, vector<128x128xbf16>
    %cst = arith.constant dense<0.000000e+00> : vector<8x128xf32>
    %3 = tpu.matmul %1, %2, %cst {dimension_numbers = #tpu.dot_dimension_numbers<[1], [0], [0], [1], [0, 0, 1, 1], [], []>} : vector<8x128xbf16>, vector<128x128xbf16>, vector<8x128xf32> -> vector<8x128xf32>
    %c0_3 = arith.constant 0 : index
    %c0_4 = arith.constant 0 : index
    %4 = vector.load %arg4[%c0_3, %c0_4] : memref<1x128xf32, #tpu.memory_space<vmem>>, vector<1x128xf32>
    %5 = vector.broadcast %4 : vector<1x128xf32> to vector<8x128xf32>
    %6 = arith.addf %3, %5 : vector<8x128xf32>
    %cst_5 = arith.constant 0.000000e+00 : f32
    %7 = vector.broadcast %cst_5 : f32 to vector<8x128xf32>
    %8 = arith.maximumf %6, %7 : vector<8x128xf32>
    %9 = arith.truncf %8 : vector<8x128xf32> to vector<8x128xbf16>
    %c0_6 = arith.constant 0 : index
    %c0_7 = arith.constant 0 : index
    %10 = vector.load %arg5[%c0_6, %c0_7] : memref<128x128xbf16, #tpu.memory_space<vmem>>, vector<128x128xbf16>
    %cst_8 = arith.constant dense<0.000000e+00> : vector<8x128xf32>
    %11 = tpu.matmul %9, %10, %cst_8 {dimension_numbers = #tpu.dot_dimension_numbers<[1], [0], [0], [1], [0, 0, 1, 1], [], []>} : vector<8x128xbf16>, vector<128x128xbf16>, vector<8x128xf32> -> vector<8x128xf32>
    %c0_i32 = arith.constant 0 : i32
    %12 = arith.cmpi eq, %arg1, %c0_i32 : i32
    %13 = arith.extui %12 : i1 to i32
    %c0_i32_9 = arith.constant 0 : i32
    %14 = arith.cmpi ne, %13, %c0_i32_9 : i32
    scf.if %14 {
      %c0_12 = arith.constant 0 : index
      %c0_13 = arith.constant 0 : index
      %18 = vector.load %arg6[%c0_12, %c0_13] : memref<1x128xf32, #tpu.memory_space<vmem>>, vector<1x128xf32>
      %19 = vector.broadcast %18 : vector<1x128xf32> to vector<8x128xf32>
      %20 = arith.addf %11, %19 : vector<8x128xf32>
      %c0_14 = arith.constant 0 : index
      %c0_15 = arith.constant 0 : index
      %21 = vector.load %arg7[%c0_14, %c0_15] : memref<8x128xf32, #tpu.memory_space<vmem>>, vector<8x128xf32>
      tpu.vector_store %arg7[%c0_14, %c0_15], %20 {strides = array<i32>} : memref<8x128xf32, #tpu.memory_space<vmem>>, vector<8x128xf32>,
    } else {
    }
    %c0_i32_10 = arith.constant 0 : i32
    %15 = arith.cmpi sgt, %arg1, %c0_i32_10 : i32
    %16 = arith.extui %15 : i1 to i32
    %c0_i32_11 = arith.constant 0 : i32
    %17 = arith.cmpi ne, %16, %c0_i32_11 : i32
    scf.if %17 {
      %c0_12 = arith.constant 0 : index
      %c0_13 = arith.constant 0 : index
      %18 = vector.load %arg7[%c0_12, %c0_13] : memref<8x128xf32, #tpu.memory_space<vmem>>, vector<8x128xf32>
      %19 = arith.addf %18, %11 : vector<8x128xf32>
      %c0_14 = arith.constant 0 : index
      %c0_15 = arith.constant 0 : index
      %20 = vector.load %arg7[%c0_14, %c0_15] : memref<8x128xf32, #tpu.memory_space<vmem>>, vector<8x128xf32>
      tpu.vector_store %arg7[%c0_14, %c0_15], %19 {strides = array<i32>} : memref<8x128xf32, #tpu.memory_space<vmem>>, vector<8x128xf32>,
    } else {
    }
    return
  }
  func.func @transform_0(%arg0: i32, %arg1: i32) -> (i32, i32) {
    %c0_i32 = arith.constant 0 : i32
    %c0_i32_0 = arith.constant 0 : i32
    return %arg0, %c0_i32 : i32, i32
  }
  func.func @transform_1(%arg0: i32, %arg1: i32) -> (i32, i32) {
    %c0_i32 = arith.constant 0 : i32
    %c0_i32_0 = arith.constant 0 : i32
    return %c0_i32, %arg1 : i32, i32
  }
  func.func @transform_2(%arg0: i32, %arg1: i32) -> (i32, i32) {
    %c0_i32 = arith.constant 0 : i32
    %c0_i32_0 = arith.constant 0 : i32
    return %c0_i32, %arg1 : i32, i32
  }
  func.func @transform_3(%arg0: i32, %arg1: i32) -> (i32, i32) {
    %c0_i32 = arith.constant 0 : i32
    %c0_i32_0 = arith.constant 0 : i32
    return %arg1, %c0_i32 : i32, i32
  }
  func.func @transform_4(%arg0: i32, %arg1: i32) -> (i32, i32) {
    %c0_i32 = arith.constant 0 : i32
    %c0_i32_0 = arith.constant 0 : i32
    %c0_i32_1 = arith.constant 0 : i32
    return %c0_i32, %c0_i32_0 : i32, i32
  }
  func.func @transform_5(%arg0: i32, %arg1: i32) -> (i32, i32) {
    %c0_i32 = arith.constant 0 : i32
    %c0_i32_0 = arith.constant 0 : i32
    return %arg0, %c0_i32 : i32, i32
  }
}

</mosaic_0001>

<llo_original>
// kernel: two_layer_net_forward.1
$region0: #{two_layer_net_forward.1}
  #allocation0 [shape = 'u32[]', space=smem, size = 0x4, offset = 0x4, fixed_abs, tag = 'smem constant byte address 0x4 - core index']
  #allocation1 [shape = 'u32[144,128]{1,0:T(1,128)}', space=vmem, size = 0x12000, scoped, tag = 'internal scratch']
  %s0 = inlined_call_operand.vmem [shape: f32[8,128], index: 0, kind: input, shape index: {}]
  %s1 = inlined_call_operand.hbm [shape: bf16[128,128], index: 1, kind: input, shape index: {}]
  %s2 = inlined_call_operand.vmem [shape: f32[1,128], index: 2, kind: input, shape index: {}]
  %s3 = inlined_call_operand.hbm [shape: bf16[128,128], index: 3, kind: input, shape index: {}]
  %s4 = inlined_call_operand.vmem [shape: f32[1,128], index: 4, kind: input, shape index: {}]
  %s5 = inlined_call_operand.hbm [shape: f32[8,128], index: 5, kind: output, shape index: {}]
  %s6 = sld [smem:[#allocation0]]
  $region46: #{two_layer_net_forward.1} parent=0
    _
  %s8 = ssub.s32 1, %s6
  %s9 = scalar_select 0, %s8, %s6
  $region1: #{two_layer_net_forward.1} parent=0
    #allocation2 [shape = 'u8[32768]{0}', space=vmem, size = 0x8000, scoped, tag = 'input window, operand 1, single buffered']
    #allocation3 [shape = 's32[1]{0}', space=sflag, size = 0x4, scoped, tag = 'scoped memory for two_layer_net_forward.1']
    #allocation4 [shape = 's32[1]{0}', space=sflag, size = 0x4, scoped, tag = 'scoped memory for two_layer_net_forward.1']
    #allocation5 [shape = 'u8[32768]{0}', space=vmem, size = 0x8000, scoped, tag = 'input window, operand 3, single buffered']
    #allocation6 [shape = 's32[1]{0}', space=sflag, size = 0x4, scoped, tag = 'scoped memory for two_layer_net_forward.1']
    #allocation7 [shape = 'u8[4096]{0}', space=vmem, size = 0x1000, scoped, tag = 'output window, operand 0, single buffered']
    %10 = vsyncpa [#allocation3], 0
    %11 = vsyncpa [#allocation6], 0
    %12 = vsyncpa [#allocation4], 0
    // Predicated region
    $region2: #{two_layer_net_forward.1} parent=1 // pred_check
      _
    $region3: #{two_layer_net_forward.1} parent=1 // pred_check_branch
      %14 = sbr.rel (0) target = $region5
    $region4: #{two_layer_net_forward.1} parent=1 // pred_region
      _
    $region5: #{two_layer_net_forward.1} parent=1 // pred_fallthru
      _
    // Predicated region
    $region6: #{two_layer_net_forward.1} parent=1 // pred_check
      _
    $region7: #{two_layer_net_forward.1} parent=1 // pred_check_branch
      %16 = sbr.rel (0) target = $region9
    $region8: #{two_layer_net_forward.1} parent=1 // pred_region
      %s18 = ssub.s32 1024, 1024
      %19 = vsyncadd [#allocation3], %s18
      %s20 = sshll.u32 [#allocation2], 4
      %s21 = int_to_ptr.vmem [resolvable:$true] %s20
      %26 = dma.hbm_to_vmem [thread:$0]  %s1, 1024, %s21, [#allocation3], 64, 64, 4
    $region9: #{two_layer_net_forward.1} parent=1 // pred_fallthru
      _
    // Predicated region
    $region10: #{two_layer_net_forward.1} parent=1 // pred_check
      _
    $region11: #{two_layer_net_forward.1} parent=1 // pred_check_branch
      %28 = sbr.rel (0) target = $region13
    $region12: #{two_layer_net_forward.1} parent=1 // pred_region
      _
    $region13: #{two_layer_net_forward.1} parent=1 // pred_fallthru
      _
    // Predicated region
    $region14: #{two_layer_net_forward.1} parent=1 // pred_check
      _
    $region15: #{two_layer_net_forward.1} parent=1 // pred_check_branch
      %30 = sbr.rel (0) target = $region17
    $region16: #{two_layer_net_forward.1} parent=1 // pred_region
      %s32 = ssub.s32 1024, 1024
      %33 = vsyncadd [#allocation6], %s32
      %s34 = sshll.u32 [#allocation5], 4
      %s35 = int_to_ptr.vmem [resolvable:$true] %s34
      %40 = dma.hbm_to_vmem [thread:$0]  %s3, 1024, %s35, [#allocation6], 64, 64, 4
    $region17: #{two_layer_net_forward.1} parent=1 // pred_fallthru
      _
    // Predicated region
    $region18: #{two_layer_net_forward.1} parent=1 // pred_check
      _
    $region19: #{two_layer_net_forward.1} parent=1 // pred_check_branch
      %42 = sbr.rel (0) target = $region21
    $region20: #{two_layer_net_forward.1} parent=1 // pred_region
      _
    $region21: #{two_layer_net_forward.1} parent=1 // pred_fallthru
      _
    // Predicated region
    $region22: #{two_layer_net_forward.1} parent=1 // pred_check
      _
    $region23: #{two_layer_net_forward.1} parent=1 // pred_check_branch
      %44 = sbr.rel (0) target = $region25
    $region24: #{two_layer_net_forward.1} parent=1 // pred_region
      %45 = dma.done [#allocation3], 1024
    $region25: #{two_layer_net_forward.1} parent=1 // pred_fallthru
      _
    // Predicated region
    $region26: #{two_layer_net_forward.1} parent=1 // pred_check
      _
    $region27: #{two_layer_net_forward.1} parent=1 // pred_check_branch
      %47 = sbr.rel (0) target = $region29
    $region28: #{two_layer_net_forward.1} parent=1 // pred_region
      %48 = dma.done [#allocation6], 1024
    $region29: #{two_layer_net_forward.1} parent=1 // pred_fallthru
      _
    %v50 = vld [vmem:[%s0] sm:$0xff]
    %v51 = vpack.c.bf16 %v50, %v50
    %v52 = vld [vmem:[#allocation2] sm:$0xf]
    %v53 = vld [vmem:[#allocation2 + $0x4] sm:$0xf]
    %v54 = vld [vmem:[#allocation2 + $0x8] sm:$0xf]
    %v55 = vld [vmem:[#allocation2 + $0xc] sm:$0xf]
    %v56 = vld [vmem:[#allocation2 + $0x10] sm:$0xf]
    %v57 = vld [vmem:[#allocation2 + $0x14] sm:$0xf]
    %v58 = vld [vmem:[#allocation2 + $0x18] sm:$0xf]
    %v59 = vld [vmem:[#allocation2 + $0x1c] sm:$0xf]
    %v60 = vld [vmem:[#allocation2 + $0x20] sm:$0xf]
    %v61 = vld [vmem:[#allocation2 + $0x24] sm:$0xf]
    %v62 = vld [vmem:[#allocation2 + $0x28] sm:$0xf]
    %v63 = vld [vmem:[#allocation2 + $0x2c] sm:$0xf]
    %v64 = vld [vmem:[#allocation2 + $0x30] sm:$0xf]
    %v65 = vld [vmem:[#allocation2 + $0x34] sm:$0xf]
    %v66 = vld [vmem:[#allocation2 + $0x38] sm:$0xf]
    %v67 = vld [vmem:[#allocation2 + $0x3c] sm:$0xf]
    %v68 = vld [vmem:[%s2] sm:$0x1]
    %v70 = vlaneseq
    %v71 = vshrl.u32 %v70, 7
    %v72 = vsub.s32 0, %v71
    %v73 = vrot.slane %v68, %v72
    %v91 = vunpack.c.l.b16 %v52
    %v92 = vunpack.c.l.b16 %v53
    %v93 = vunpack.c.l.b16 %v54
    %v94 = vunpack.c.l.b16 %v55
    %v95 = vunpack.c.l.b16 %v56
    %v96 = vunpack.c.l.b16 %v57
    %v97 = vunpack.c.l.b16 %v58
    %v98 = vunpack.c.l.b16 %v59
    %v99 = vunpack.c.l.b16 %v60
    %v100 = vunpack.c.l.b16 %v61
    %v101 = vunpack.c.l.b16 %v62
    %v102 = vunpack.c.l.b16 %v63
    %v103 = vunpack.c.l.b16 %v64
    %v104 = vunpack.c.l.b16 %v65
    %v105 = vunpack.c.l.b16 %v66
    %v106 = vunpack.c.l.b16 %v67
    %v107 = vpack.c.b16 %v92, %v91
    %v108 = vpack.c.b16 %v94, %v93
    %v109 = vpack.c.b16 %v96, %v95
    %v110 = vpack.c.b16 %v98, %v97
    %v111 = vpack.c.b16 %v100, %v99
    %v112 = vpack.c.b16 %v102, %v101
    %v113 = vpack.c.b16 %v104, %v103
    %v114 = vpack.c.b16 %v106, %v105
    %123 = vmatprep.subr.bf16.mxu0 0
    %124 = vmatpush1.bf16.msra.mxu0 %v114
    %125 = vmatprep.subr.bf16.mxu0 0
    %126 = vmatpush1.bf16.msra.mxu0 %v113
    %127 = vmatprep.subr.bf16.mxu0 0
    %128 = vmatpush1.bf16.msra.mxu0 %v112
    %129 = vmatprep.subr.bf16.mxu0 0
    %130 = vmatpush1.bf16.msra.mxu0 %v111
    %131 = vmatprep.subr.bf16.mxu0 0
    %132 = vmatpush1.bf16.msra.mxu0 %v110
    %133 = vmatprep.subr.bf16.mxu0 0
    %134 = vmatpush1.bf16.msra.mxu0 %v109
    %135 = vmatprep.subr.bf16.mxu0 0
    %136 = vmatpush1.bf16.msra.mxu0 %v108
    %137 = vmatprep.subr.bf16.mxu0 0
    %138 = vmatpush1.bf16.msra.mxu0 %v107
    %139 = vmatprep.subr.bf16.mxu0 0
    %140 = vmatpush2.bf16.msra.mxu0 0
    %141 = vmatprep.subr.bf16.mxu0 0
    %142 = vmatpush2.bf16.msra.mxu0 0
    %143 = vmatprep.subr.bf16.mxu0 0
    %144 = vmatpush2.bf16.msra.mxu0 0
    %145 = vmatprep.subr.bf16.mxu0 0
    %146 = vmatpush2.bf16.msra.mxu0 0
    %147 = vmatprep.subr.bf16.mxu0 0
    %148 = vmatpush2.bf16.msra.mxu0 0
    %149 = vmatprep.subr.bf16.mxu0 0
    %150 = vmatpush2.bf16.msra.mxu0 0
    %151 = vmatprep.subr.bf16.mxu0 0
    %152 = vmatpush2.bf16.msra.mxu0 0
    %153 = vmatprep.subr.bf16.mxu0 0
    %154 = vmatpush2.bf16.msra.mxu0 0
    %155 = vmatprep.mubr.bf16.mxu0 0
    %156 = vmatmul.mubr.bf16.gmra.mxu0 %v51
    %v157 = vpop.f32.mrf.mxu0
    %v158 = vadd.f32 %v73, %v157
    %v159 = vpop.f32.mrf.mxu0
    %v160 = vpop.f32.mrf.mxu0
    %v161 = vpop.f32.mrf.mxu0
    %162 = vdwg.mxu0
    %v163 = vmax.f32 %v158, 0.0
    %v164 = vpack.c.bf16 %v163, %v163
    %v165 = vld [vmem:[#allocation5] sm:$0xf]
    %v166 = vld [vmem:[#allocation5 + $0x4] sm:$0xf]
    %v167 = vld [vmem:[#allocation5 + $0x8] sm:$0xf]
    %v168 = vld [vmem:[#allocation5 + $0xc] sm:$0xf]
    %v169 = vld [vmem:[#allocation5 + $0x10] sm:$0xf]
    %v170 = vld [vmem:[#allocation5 + $0x14] sm:$0xf]
    %v171 = vld [vmem:[#allocation5 + $0x18] sm:$0xf]
    %v172 = vld [vmem:[#allocation5 + $0x1c] sm:$0xf]
    %v173 = vld [vmem:[#allocation5 + $0x20] sm:$0xf]
    %v174 = vld [vmem:[#allocation5 + $0x24] sm:$0xf]
    %v175 = vld [vmem:[#allocation5 + $0x28] sm:$0xf]
    %v176 = vld [vmem:[#allocation5 + $0x2c] sm:$0xf]
    %v177 = vld [vmem:[#allocation5 + $0x30] sm:$0xf]
    %v178 = vld [vmem:[#allocation5 + $0x34] sm:$0xf]
    %v179 = vld [vmem:[#allocation5 + $0x38] sm:$0xf]
    %v180 = vld [vmem:[#allocation5 + $0x3c] sm:$0xf]
    %v197 = vunpack.c.l.b16 %v165
    %v198 = vunpack.c.l.b16 %v166
    %v199 = vunpack.c.l.b16 %v167
    %v200 = vunpack.c.l.b16 %v168
    %v201 = vunpack.c.l.b16 %v169
    %v202 = vunpack.c.l.b16 %v170
    %v203 = vunpack.c.l.b16 %v171
    %v204 = vunpack.c.l.b16 %v172
    %v205 = vunpack.c.l.b16 %v173
    %v206 = vunpack.c.l.b16 %v174
    %v207 = vunpack.c.l.b16 %v175
    %v208 = vunpack.c.l.b16 %v176
    %v209 = vunpack.c.l.b16 %v177
    %v210 = vunpack.c.l.b16 %v178
    %v211 = vunpack.c.l.b16 %v179
    %v212 = vunpack.c.l.b16 %v180
    %v213 = vpack.c.b16 %v198, %v197
    %v214 = vpack.c.b16 %v200, %v199
    %v215 = vpack.c.b16 %v202, %v201
    %v216 = vpack.c.b16 %v204, %v203
    %v217 = vpack.c.b16 %v206, %v205
    %v218 = vpack.c.b16 %v208, %v207
    %v219 = vpack.c.b16 %v210, %v209
    %v220 = vpack.c.b16 %v212, %v211
    %229 = vmatprep.subr.bf16.mxu0 0
    %230 = vmatpush1.bf16.msra.mxu0 %v220
    %231 = vmatprep.subr.bf16.mxu0 0
    %232 = vmatpush1.bf16.msra.mxu0 %v219
    %233 = vmatprep.subr.bf16.mxu0 0
    %234 = vmatpush1.bf16.msra.mxu0 %v218
    %235 = vmatprep.subr.bf16.mxu0 0
    %236 = vmatpush1.bf16.msra.mxu0 %v217
    %237 = vmatprep.subr.bf16.mxu0 0
    %238 = vmatpush1.bf16.msra.mxu0 %v216
    %239 = vmatprep.subr.bf16.mxu0 0
    %240 = vmatpush1.bf16.msra.mxu0 %v215
    %241 = vmatprep.subr.bf16.mxu0 0
    %242 = vmatpush1.bf16.msra.mxu0 %v214
    %243 = vmatprep.subr.bf16.mxu0 0
    %244 = vmatpush1.bf16.msra.mxu0 %v213
    %245 = vmatprep.subr.bf16.mxu0 0
    %246 = vmatpush2.bf16.msra.mxu0 0
    %247 = vmatprep.subr.bf16.mxu0 0
    %248 = vmatpush2.bf16.msra.mxu0 0
    %249 = vmatprep.subr.bf16.mxu0 0
    %250 = vmatpush2.bf16.msra.mxu0 0
    %251 = vmatprep.subr.bf16.mxu0 0
    %252 = vmatpush2.bf16.msra.mxu0 0
    %253 = vmatprep.subr.bf16.mxu0 0
    %254 = vmatpush2.bf16.msra.mxu0 0
    %255 = vmatprep.subr.bf16.mxu0 0
    %256 = vmatpush2.bf16.msra.mxu0 0
    %257 = vmatprep.subr.bf16.mxu0 0
    %258 = vmatpush2.bf16.msra.mxu0 0
    %259 = vmatprep.subr.bf16.mxu0 0
    %260 = vmatpush2.bf16.msra.mxu0 0
    %261 = vmatprep.mubr.bf16.mxu0 0
    %262 = vmatmul.mubr.bf16.gmra.mxu0 %v164
    %v263 = vpop.f32.mrf.mxu0
    %v264 = vadd.f32 0.0, %v263
    %v265 = vpop.f32.mrf.mxu0
    %v266 = vpop.f32.mrf.mxu0
    %v267 = vpop.f32.mrf.mxu0
    %268 = vdwg.mxu0
    %p269 = scmp.eq.s32.totalorder 0, 0
    // Predicated region
    $region30: #{two_layer_net_forward.1} parent=1 // pred_check
      %p270 = pneg %p269
    $region31: #{two_layer_net_forward.1} parent=1 // pred_check_branch
      %272 = sbr.rel (%p270) target = $region33
    $region32: #{two_layer_net_forward.1} parent=1 // pred_region
      %v273 = vld [vmem:[%s4] sm:$0x1]
      %v275 = vlaneseq
      %v276 = vshrl.u32 %v275, 7
      %v277 = vsub.s32 0, %v276
      %v278 = vrot.slane %v273, %v277
      %v280 = vadd.f32 %v264, %v278
      %281 = vst [vmem:[#allocation7] sm:$0xff] %v280
    $region33: #{two_layer_net_forward.1} parent=1 // pred_fallthru
      _
    %p282 = scmp.gt.s32.totalorder 0, 0
    // Predicated region
    $region34: #{two_layer_net_forward.1} parent=1 // pred_check
      %p283 = pneg %p282
    $region35: #{two_layer_net_forward.1} parent=1 // pred_check_branch
      %285 = sbr.rel (%p283) target = $region37
    $region36: #{two_layer_net_forward.1} parent=1 // pred_region
      %v286 = vld [vmem:[#allocation7] sm:$0xff]
      %v287 = vadd.f32 %v286, %v264
      %288 = vst [vmem:[#allocation7] sm:$0xff] %v287
    $region37: #{two_layer_net_forward.1} parent=1 // pred_fallthru
      _
    // Predicated region
    $region38: #{two_layer_net_forward.1} parent=1 // pred_check
      _
    $region39: #{two_layer_net_forward.1} parent=1 // pred_check_branch
      %290 = sbr.rel (0) target = $region41
    $region40: #{two_layer_net_forward.1} parent=1 // pred_region
      %s292 = ssub.s32 128, 128
      %293 = vsyncadd [#allocation4], %s292
      %s295 = sshll.u32 [#allocation7], 4
      %s296 = int_to_ptr.vmem [resolvable:$true] %s295
      %298 = dma.vmem_to_hbm [thread:$0]  %s296, 128, %s5, [#allocation4]
    $region41: #{two_layer_net_forward.1} parent=1 // pred_fallthru
      _
    // Predicated region
    $region42: #{two_layer_net_forward.1} parent=1 // pred_check
      _
    $region43: #{two_layer_net_forward.1} parent=1 // pred_check_branch
      %300 = sbr.rel (0) target = $region45
    $region44: #{two_layer_net_forward.1} parent=1 // pred_region
      %301 = dma.done [#allocation4], 128
    $region45: #{two_layer_net_forward.1} parent=1 // pred_fallthru
      _
    %302 = vsyncpa [#allocation3], 1
    %303 = vsyncpa [#allocation6], 1
    %304 = vsyncpa [#allocation4], 1

</llo_original>
